<compile_context>
chip_gen: v7x
topology: tpu7x:2x2x1
jax: 0.10.0
libtpu: 0.0.40
codegen_flags: <defaults>
</compile_context>

<pallas_src>
import functools
import math

import jax
import jax.numpy as jnp
from jax import lax
from jax.experimental import pallas as pl
from jax.experimental.pallas import tpu as pltpu


_VMEM = pl.BlockSpec(memory_space=pltpu.MemorySpace.VMEM)
_HI = lax.Precision.HIGHEST


# ----------------------------------------------------------------------------------
# in-kernel math helpers (all f32 elementwise)
# ----------------------------------------------------------------------------------
def _erf(x):
    # Abramowitz & Stegun 7.1.26 (|err| < 1.5e-7) using exp/mul/add/where only.
    a1, a2, a3, a4, a5 = 0.254829592, -0.284496736, 1.421413741, -1.453152027, 1.061405429
    p = 0.3275911
    sign = jnp.where(x >= 0.0, 1.0, -1.0)
    ax = jnp.abs(x)
    t = 1.0 / (1.0 + p * ax)
    poly = ((((a5 * t + a4) * t + a3) * t + a2) * t + a1) * t
    return sign * (1.0 - poly * jnp.exp(-ax * ax))


def _gelu_exact(x):
    # matches torch.nn.GELU() (erf based)
    # TODO(synk): switch to the tanh approximation (pure EUP) if downstream tolerance allows.
    return 0.5 * x * (1.0 + _erf(x * 0.7071067811865476))


def _ln_grouped(y, gavg, gamma, beta):
    # LayerNorm2d over each C4-sublane group (one stage-1 pixel per group),
    # single-pass stats: E[x], E[x^2] broadcast back within the group by `gavg`.
    mf = jnp.dot(gavg, y, preferred_element_type=jnp.float32, precision=_HI)
    m2f = jnp.dot(gavg, y * y, preferred_element_type=jnp.float32, precision=_HI)
    var = m2f - mf * mf
    return (y - mf) * lax.rsqrt(var + 1e-6) * gamma + beta


def _ln_channels(y, gamma, beta):
    # LayerNorm2d over all channels (sublane axis), single-pass stats.
    u = jnp.mean(y, axis=0, keepdims=True)
    u2 = jnp.mean(y * y, axis=0, keepdims=True)
    var = u2 - u * u
    return (y - u) * lax.rsqrt(var + 1e-6) * gamma + beta


# ----------------------------------------------------------------------------------
# kernels
# ----------------------------------------------------------------------------------
def _sparse_kernel(pts_ref, gemb_ref, o_ref, *, F):
    # pts:  (R, 8)  columns = [cx, cy, label, 0, ...]     (labels stored exactly as floats)
    # gemb: (8, D)  rows    = [gauss0, gauss1, not_a_point, pe0, pe1, pe2, pe3, 0]
    cx = pts_ref[:, 0:1]
    cy = pts_ref[:, 1:2]
    lab = pts_ref[:, 2:3]
    x = 2.0 * cx - 1.0
    y = 2.0 * cy - 1.0
    ang = (2.0 * math.pi) * (x * gemb_ref[0:1, 0:F] + y * gemb_ref[1:2, 0:F])     # (R, F)
    nap = gemb_ref[2:3, :]
    add = (jnp.where(lab == 0.0, gemb_ref[3:4, :], 0.0)
           + jnp.where(lab == 1.0, gemb_ref[4:5, :], 0.0)
           + jnp.where(lab == 2.0, gemb_ref[5:6, :], 0.0)
           + jnp.where(lab == 3.0, gemb_ref[6:7, :], 0.0))                        # (R, D)
    is_nap = lab == -1.0
    # write sin/cos directly into the two halves of the D-wide output (no concat)
    o_ref[:, 0:F] = jnp.where(is_nap, nap[:, 0:F], jnp.sin(ang) + add[:, 0:F])
    o_ref[:, F:2 * F] = jnp.where(is_nap, nap[:, F:2 * F], jnp.cos(ang) + add[:, F:2 * F])


def _dense_kernel(x1_ref, wpack_ref, pvec_ref, o_ref, *, C, D):
    # x1:    (1, 16, T) im2col tile; row = q*4 + k (q = stage-2 kernel pos, k = stage-1 tap)
    # wpack: (3C+D, Kc) = [W1 block-diag | group-avg | merged W2 | W3], Kc = max(16, C)
    # pvec:  (Dpad, 8)  = columns [b1rep, g1rep, be1rep, b2, g2, be2, b3, 0]
    # o:     (1, D, T)  lane-dense per-batch output tile
    x1 = x1_ref[0]                                                                # (16, T)
    w1blk = wpack_ref[0:C, 0:16]                                                  # (C, 16)
    gavg = wpack_ref[C:2 * C, 0:C]                                                # (C, C)
    w2m = wpack_ref[2 * C:3 * C, 0:C]                                             # (C, C)
    w3 = wpack_ref[3 * C:3 * C + D, 0:C]                                          # (D, C)

    b1c, g1c, be1c = pvec_ref[0:C, 0:1], pvec_ref[0:C, 1:2], pvec_ref[0:C, 2:3]
    b2c, g2c, be2c = pvec_ref[0:C, 3:4], pvec_ref[0:C, 4:5], pvec_ref[0:C, 5:6]
    b3c = pvec_ref[0:D, 6:7]

    # stage 1: conv2x2/s2 for all 4 stage-1 positions in one MXU push, grouped LN, GELU
    y1 = jnp.dot(w1blk, x1, preferred_element_type=jnp.float32, precision=_HI) + b1c
    y1 = _gelu_exact(_ln_grouped(y1, gavg, g1c, be1c))                            # (C, T)

    # stage 2: conv2x2/s2 merged into a single (C, C) x (C, T) dot, LN, GELU
    y2 = jnp.dot(w2m, y1, preferred_element_type=jnp.float32, precision=_HI) + b2c
    y2 = _gelu_exact(_ln_channels(y2, g2c, be2c))                                 # (C, T)

    # stage 3: 1x1 conv
    o_ref[0] = jnp.dot(w3, y2, preferred_element_type=jnp.float32, precision=_HI) + b3c


# ----------------------------------------------------------------------------------
# XLA-side input preparation (cheap packing / small reshapes)
# ----------------------------------------------------------------------------------
def _pick_tile(P, target=1024):
    """Largest lane tile <= target that divides P (multiple of 128 when tiling)."""
    if P <= target:
        return P
    t = (target // 128) * 128
    while t >= 128:
        if P % t == 0:
            return t
        t -= 128
    return P


def _embed_sparse_pallas(params, points, boxes, input_image_size, D):
    F = D // 2
    cx_list, cy_list, lab_list = [], [], []
    if points is not None:
        coords, labels = points
        Bp = coords.shape[0]
        coords = coords.astype(jnp.float32) + 0.5
        labels = labels.astype(jnp.float32)
        if boxes is None:  # torch pads with a "not a point" entry
            coords = jnp.concatenate([coords, jnp.zeros((Bp, 1, 2), jnp.float32)], axis=1)
            labels = jnp.concatenate([labels, -jnp.ones((Bp, 1), jnp.float32)], axis=1)
        cx_list.append(coords[..., 0] / input_image_size[1])
        cy_list.append(coords[..., 1] / input_image_size[0])
        lab_list.append(labels)
    if boxes is not None:
        corners = (boxes.astype(jnp.float32) + 0.5).reshape(-1, 2, 2)
        cx_list.append(corners[..., 0] / input_image_size[1])
        cy_list.append(corners[..., 1] / input_image_size[0])
        lab_list.append(jnp.broadcast_to(jnp.array([[2.0, 3.0]], jnp.float32),
                                         (corners.shape[0], 2)))
    cx = jnp.concatenate(cx_list, axis=1)
    cy = jnp.concatenate(cy_list, axis=1)
    lab = jnp.concatenate(lab_list, axis=1)
    B, N = cx.shape
    R = B * N

    pts = jnp.stack([cx.reshape(R), cy.reshape(R), lab.reshape(R)], axis=1)       # (R, 3)
    pts = jnp.pad(pts, ((0, 0), (0, 5)))                                          # (R, 8)
    gpad = jnp.pad(params["gauss"].astype(jnp.float32), ((0, 0), (0, D - F)))     # (2, D)
    gemb = jnp.concatenate([gpad,
                            params["not_a_point"].astype(jnp.float32),
                            params["point_embeds"].astype(jnp.float32),
                            jnp.zeros((1, D), jnp.float32)], axis=0)              # (8, D)

    out = pl.pallas_call(
        functools.partial(_sparse_kernel, F=F),
        out_shape=jax.ShapeDtypeStruct((R, D), jnp.float32),
        in_specs=[_VMEM, _VMEM],
        out_specs=_VMEM,
    )(pts, gemb)
    return out.reshape(B, N, D)


def _embed_masks_pallas(params, masks, H2, W2, D, *, lane_tile=1024):
    B = masks.shape[0]
    C4 = params["w1"].shape[0]
    C = params["w2"].shape[0]
    assert 4 * C4 == C, "mask_in_chans must be divisible by 4"
    P = H2 * W2

    # im2col of the mask at stage-2 resolution: rows = (stage-2 tap q, stage-1 tap k).
    # TODO(synk): fold this unpack into the kernel (raw-mask BlockSpec + strided
    # in-kernel slices) so the mask tensor is read from HBM only once.
    m = masks.astype(jnp.float32).reshape(B, H2, 2, 2, W2, 2, 2)   # b,i2,r,kh,j2,s,kw
    x1 = m.transpose(0, 2, 5, 3, 6, 1, 4).reshape(B, 16, P)        # row = (r*2+s)*4 + kh*2+kw

    # Packed weights:  W1 block-diag (C,16) | group-average (C,C) | merged W2 (C,C) | W3 (D,C)
    Kc = max(16, C)
    w1flat = params["w1"].astype(jnp.float32).reshape(C4, 4)
    w1blk = jnp.kron(jnp.eye(4, dtype=jnp.float32), w1flat)                       # (C, 16)
    gavg = jnp.kron(jnp.eye(4, dtype=jnp.float32),
                    jnp.full((C4, C4), 1.0 / C4, jnp.float32))                    # (C, C)
    w2m = params["w2"].astype(jnp.float32).transpose(0, 2, 3, 1).reshape(C, C)    # (C, C)
    w3 = params["w3"].astype(jnp.float32).reshape(D, C)                           # (D, C)

    def padk(a):
        return jnp.pad(a, ((0, 0), (0, Kc - a.shape[1])))

    wpack = jnp.concatenate([padk(w1blk), padk(gavg), padk(w2m), padk(w3)], axis=0)

    # Packed per-channel vectors (one DMA instead of 7).
    Dpad = ((max(C, D) + 7) // 8) * 8

    def pad1(v):
        v = jnp.asarray(v, jnp.float32).reshape(-1)
        return jnp.pad(v, (0, Dpad - v.shape[0]))

    def rep4(v):
        return jnp.tile(jnp.asarray(v, jnp.float32).reshape(-1), 4)

    pvec = jnp.stack([pad1(rep4(params["b1"])), pad1(rep4(params["g1"])),
                      pad1(rep4(params["be1"])), pad1(params["b2"]),
                      pad1(params["g2"]), pad1(params["be2"]),
                      pad1(params["b3"]), jnp.zeros((Dpad,), jnp.float32)], axis=1)  # (Dpad, 8)

    T = _pick_tile(P, lane_tile)
    nT = P // T

    flops = int(2 * B * P * (C * 16 + 3 * C * C + D * C))
    bytes_accessed = int(4 * (B * P * (16 + D) + wpack.size + pvec.size))
    transcendentals = int(2 * B * P * C)          # one exp per GELU element (two GELUs on C*P)

    dense = pl.pallas_call(
        functools.partial(_dense_kernel, C=C, D=D),
        out_shape=jax.ShapeDtypeStruct((B, D, P), jnp.float32),
        # TODO(synk): emit bf16 output if the mask-decoder consumer accepts it (halves writeback).
        grid=(B, nT),
        in_specs=[pl.BlockSpec((1, 16, T), lambda b, t: (b, 0, t)),
                  pl.BlockSpec((3 * C + D, Kc), lambda b, t: (0, 0)),
                  pl.BlockSpec((Dpad, 8), lambda b, t: (0, 0))],
        out_specs=pl.BlockSpec((1, D, T), lambda b, t: (b, 0, t)),
        compiler_params=pltpu.CompilerParams(
            dimension_semantics=("parallel", "parallel"),
            vmem_limit_bytes=32 * 1024 * 1024),
        cost_estimate=pl.CostEstimate(flops=flops, transcendentals=transcendentals,
                                      bytes_accessed=bytes_accessed),
    )(x1, wpack, pvec)

    # kernel already wrote per-batch (D, H2*W2) tiles -> NCHW is a free reshape
    return dense.reshape(B, D, H2, W2)


# ----------------------------------------------------------------------------------
# parameters (deterministic synthetic init; shapes follow PromptEncoder.__init__)
# ----------------------------------------------------------------------------------
def init_params(key, embed_dim, mask_in_chans):
    D = embed_dim
    F = D // 2
    C4 = mask_in_chans // 4
    C = mask_in_chans
    ks = jax.random.split(key, 16)
    return {
        "gauss": jax.random.normal(ks[0], (2, F), jnp.float32),
        "point_embeds": jax.random.normal(ks[1], (4, D), jnp.float32),
        "not_a_point": jax.random.normal(ks[2], (1, D), jnp.float32),
        "no_mask": jax.random.normal(ks[3], (1, D), jnp.float32),
        "w1": 0.5 * jax.random.normal(ks[4], (C4, 1, 2, 2), jnp.float32),   # OIHW
        "b1": 0.1 * jax.random.normal(ks[5], (1, C4), jnp.float32),
        "g1": 1.0 + 0.1 * jax.random.normal(ks[6], (1, C4), jnp.float32),
        "be1": 0.1 * jax.random.normal(ks[7], (1, C4), jnp.float32),
        "w2": 0.3 * jax.random.normal(ks[8], (C, C4, 2, 2), jnp.float32),   # OIHW
        "b2": 0.1 * jax.random.normal(ks[9], (1, C), jnp.float32),
        "g2": 1.0 + 0.1 * jax.random.normal(ks[10], (1, C), jnp.float32),
        "be2": 0.1 * jax.random.normal(ks[11], (1, C), jnp.float32),
        "w3": 0.3 * jax.random.normal(ks[12], (D, C, 1, 1), jnp.float32),   # OIHW (1x1)
        "b3": 0.1 * jax.random.normal(ks[13], (1, D), jnp.float32),
    }


# ----------------------------------------------------------------------------------
# PromptEncoder.forward
# ----------------------------------------------------------------------------------
def prompt_encoder_forward(params, points=None, boxes=None, masks=None, *,
                           embed_dim, image_embedding_size, input_image_size):
    D = embed_dim
    H2, W2 = image_embedding_size
    if points is not None:
        B = points[0].shape[0]
    elif boxes is not None:
        B = boxes.shape[0]
    elif masks is not None:
        B = masks.shape[0]
    else:
        B = 1

    if (points is not None) or (boxes is not None):
        sparse = _embed_sparse_pallas(params, points, boxes, input_image_size, D)
    else:
        sparse = jnp.zeros((B, 0, D), jnp.float32)

    if masks is not None:
        dense = _embed_masks_pallas(params, masks, H2, W2, D)
    else:
        # torch no-mask path is a pure expand — no compute, done in XLA.
        dense = jnp.broadcast_to(params["no_mask"].reshape(1, D, 1, 1), (B, D, H2, W2))
    return sparse, dense


# ----------------------------------------------------------------------------------
# pure-JAX reference (for correctness check)
# ----------------------------------------------------------------------------------
def reference_forward(params, coords, labels, boxes, masks, input_image_size):
    g = params["gauss"]

    def pe(cx, cy):
        x = 2.0 * cx - 1.0
        y = 2.0 * cy - 1.0
        proj = x[..., None] * g[0] + y[..., None] * g[1]
        ang = 2.0 * math.pi * proj
        return jnp.concatenate([jnp.sin(ang), jnp.cos(ang)], axis=-1)

    pts = coords + 0.5
    pt_pe = pe(pts[..., 0] / input_image_size[1], pts[..., 1] / input_image_size[0])
    lab = labels[..., None]
    pt_pe = jnp.where(lab == -1, params["not_a_point"][0], pt_pe)
    pt_pe = pt_pe + jnp.where(lab == 0, params["point_embeds"][0], 0.0)
    pt_pe = pt_pe + jnp.where(lab == 1, params["point_embeds"][1], 0.0)

    corners = (boxes + 0.5).reshape(-1, 2, 2)
    box_pe = pe(corners[..., 0] / input_image_size[1], corners[..., 1] / input_image_size[0])
    box_pe = box_pe.at[:, 0, :].add(params["point_embeds"][2])
    box_pe = box_pe.at[:, 1, :].add(params["point_embeds"][3])
    sparse = jnp.concatenate([pt_pe, box_pe], axis=1)

    def ln2d(x, gam, bet):
        u = jnp.mean(x, axis=1, keepdims=True)
        s = jnp.mean((x - u) ** 2, axis=1, keepdims=True)
        xh = (x - u) / jnp.sqrt(s + 1e-6)
        return xh * gam.reshape(1, -1, 1, 1) + bet.reshape(1, -1, 1, 1)

    gelu = lambda x: jax.nn.gelu(x, approximate=False)
    y = lax.conv_general_dilated(masks, params["w1"], (2, 2), "VALID",
                                 precision=lax.Precision.HIGHEST) + params["b1"].reshape(1, -1, 1, 1)
    y = gelu(ln2d(y, params["g1"], params["be1"]))
    y = lax.conv_general_dilated(y, params["w2"], (2, 2), "VALID",
                                 precision=lax.Precision.HIGHEST) + params["b2"].reshape(1, -1, 1, 1)
    y = gelu(ln2d(y, params["g2"], params["be2"]))
    y = lax.conv_general_dilated(y, params["w3"], (1, 1), "VALID",
                                 precision=lax.Precision.HIGHEST) + params["b3"].reshape(1, -1, 1, 1)
    return sparse, y


# ----------------------------------------------------------------------------------
if __name__ == "__main__":
    embed_dim = 32
    mask_in_chans = 16
    image_embedding_size = (8, 8)
    input_image_size = (128, 128)   # mask_input_size = 4 * image_embedding_size = (32, 32)

    root = jax.random.PRNGKey(0)
    k_params, k_coords, k_boxes, k_masks = jax.random.split(root, 4)

    params = init_params(k_params, embed_dim, mask_in_chans)

    B, Np = 2, 3
    coords = jax.random.uniform(k_coords, (B, Np, 2), jnp.float32, 0.0, 128.0)
    labels = jnp.array([[1, 0, -1], [0, 1, 1]], jnp.int32)
    boxes = jax.random.uniform(k_boxes, (B, 4), jnp.float32, 0.0, 128.0)
    masks = jax.random.normal(k_masks, (B, 1, 32, 32), jnp.float32)

    sparse, dense = prompt_encoder_forward(
        params, points=(coords, labels), boxes=boxes, masks=masks,
        embed_dim=embed_dim, image_embedding_size=image_embedding_size,
        input_image_size=input_image_size)
    jax.block_until_ready((sparse, dense))

    sparse_ref, dense_ref = reference_forward(params, coords, labels, boxes, masks,
                                              input_image_size)

    assert sparse.shape == (B, Np + 2, embed_dim), sparse.shape
    assert dense.shape == (B, embed_dim, image_embedding_size[0], image_embedding_size[1]), dense.shape
    assert jnp.allclose(sparse, sparse_ref, atol=1e-4, rtol=1e-4), "sparse mismatch"
    # all matmuls now use f32 operands (tiny K) -> tolerance tightened 25x vs the bf16 version
    assert jnp.allclose(dense, dense_ref, atol=2e-3, rtol=2e-3), "dense mismatch"

    print("KERNEL_OK")
</pallas_src>

<mosaic_0001>
module attributes {stable_mosaic.version = 11 : i64} {
  func.func @_sparse_kernel(%arg0: memref<10x8xf32, #tpu.memory_space<vmem>>, %arg1: memref<8x32xf32, #tpu.memory_space<vmem>>, %arg2: memref<10x32xf32, #tpu.memory_space<vmem>>) attributes {dimension_semantics = [], scalar_prefetch = 0 : i64, scratch_operands = 0 : i64, tpu.core_type = #tpu.core_type<tc>} {
    %c0 = arith.constant 0 : index
    %c0_0 = arith.constant 0 : index
    %0 = vector.load %arg0[%c0, %c0_0] : memref<10x8xf32, #tpu.memory_space<vmem>>, vector<10x1xf32>
    %c0_1 = arith.constant 0 : index
    %c1 = arith.constant 1 : index
    %1 = vector.load %arg0[%c0_1, %c1] : memref<10x8xf32, #tpu.memory_space<vmem>>, vector<10x1xf32>
    %c0_2 = arith.constant 0 : index
    %c2 = arith.constant 2 : index
    %2 = vector.load %arg0[%c0_2, %c2] : memref<10x8xf32, #tpu.memory_space<vmem>>, vector<10x1xf32>
    %cst = arith.constant 2.000000e+00 : f32
    %3 = vector.broadcast %cst : f32 to vector<10x1xf32>
    %4 = arith.mulf %3, %0 : vector<10x1xf32>
    %cst_3 = arith.constant 1.000000e+00 : f32
    %5 = vector.broadcast %cst_3 : f32 to vector<10x1xf32>
    %6 = arith.subf %4, %5 : vector<10x1xf32>
    %cst_4 = arith.constant 2.000000e+00 : f32
    %7 = vector.broadcast %cst_4 : f32 to vector<10x1xf32>
    %8 = arith.mulf %7, %1 : vector<10x1xf32>
    %cst_5 = arith.constant 1.000000e+00 : f32
    %9 = vector.broadcast %cst_5 : f32 to vector<10x1xf32>
    %10 = arith.subf %8, %9 : vector<10x1xf32>
    %c0_6 = arith.constant 0 : index
    %c0_7 = arith.constant 0 : index
    %11 = vector.load %arg1[%c0_6, %c0_7] : memref<8x32xf32, #tpu.memory_space<vmem>>, vector<1x16xf32>
    %12 = vector.broadcast %6 : vector<10x1xf32> to vector<10x16xf32>
    %13 = vector.broadcast %11 : vector<1x16xf32> to vector<10x16xf32>
    %14 = arith.mulf %12, %13 : vector<10x16xf32>
    %c1_8 = arith.constant 1 : index
    %c0_9 = arith.constant 0 : index
    %15 = vector.load %arg1[%c1_8, %c0_9] : memref<8x32xf32, #tpu.memory_space<vmem>>, vector<1x16xf32>
    %16 = vector.broadcast %10 : vector<10x1xf32> to vector<10x16xf32>
    %17 = vector.broadcast %15 : vector<1x16xf32> to vector<10x16xf32>
    %18 = arith.mulf %16, %17 : vector<10x16xf32>
    %19 = arith.addf %14, %18 : vector<10x16xf32>
    %cst_10 = arith.constant 6.28318548 : f32
    %20 = vector.broadcast %cst_10 : f32 to vector<10x16xf32>
    %21 = arith.mulf %20, %19 : vector<10x16xf32>
    %c2_11 = arith.constant 2 : index
    %c0_12 = arith.constant 0 : index
    %22 = vector.load %arg1[%c2_11, %c0_12] : memref<8x32xf32, #tpu.memory_space<vmem>>, vector<1x32xf32>
    %cst_13 = arith.constant 0.000000e+00 : f32
    %23 = vector.broadcast %cst_13 : f32 to vector<10x1xf32>
    %24 = arith.cmpf oeq, %2, %23 : vector<10x1xf32>
    %c3 = arith.constant 3 : index
    %c0_14 = arith.constant 0 : index
    %25 = vector.load %arg1[%c3, %c0_14] : memref<8x32xf32, #tpu.memory_space<vmem>>, vector<1x32xf32>
    %cst_15 = arith.constant 0.000000e+00 : f32
    %26 = vector.shape_cast %24 : vector<10x1xi1> to vector<10x1xi1>
    %27 = vector.broadcast %26 : vector<10x1xi1> to vector<10x32xi1>
    %28 = vector.shape_cast %25 : vector<1x32xf32> to vector<1x32xf32>
    %29 = vector.broadcast %28 : vector<1x32xf32> to vector<10x32xf32>
    %30 = vector.broadcast %cst_15 : f32 to vector<10x32xf32>
    %31 = arith.select %27, %29, %30 : vector<10x32xi1>, vector<10x32xf32>
    %cst_16 = arith.constant 1.000000e+00 : f32
    %32 = vector.broadcast %cst_16 : f32 to vector<10x1xf32>
    %33 = arith.cmpf oeq, %2, %32 : vector<10x1xf32>
    %c4 = arith.constant 4 : index
    %c0_17 = arith.constant 0 : index
    %34 = vector.load %arg1[%c4, %c0_17] : memref<8x32xf32, #tpu.memory_space<vmem>>, vector<1x32xf32>
    %cst_18 = arith.constant 0.000000e+00 : f32
    %35 = vector.shape_cast %33 : vector<10x1xi1> to vector<10x1xi1>
    %36 = vector.broadcast %35 : vector<10x1xi1> to vector<10x32xi1>
    %37 = vector.shape_cast %34 : vector<1x32xf32> to vector<1x32xf32>
    %38 = vector.broadcast %37 : vector<1x32xf32> to vector<10x32xf32>
    %39 = vector.broadcast %cst_18 : f32 to vector<10x32xf32>
    %40 = arith.select %36, %38, %39 : vector<10x32xi1>, vector<10x32xf32>
    %41 = arith.addf %31, %40 : vector<10x32xf32>
    %cst_19 = arith.constant 2.000000e+00 : f32
    %42 = vector.broadcast %cst_19 : f32 to vector<10x1xf32>
    %43 = arith.cmpf oeq, %2, %42 : vector<10x1xf32>
    %c5 = arith.constant 5 : index
    %c0_20 = arith.constant 0 : index
    %44 = vector.load %arg1[%c5, %c0_20] : memref<8x32xf32, #tpu.memory_space<vmem>>, vector<1x32xf32>
    %cst_21 = arith.constant 0.000000e+00 : f32
    %45 = vector.shape_cast %43 : vector<10x1xi1> to vector<10x1xi1>
    %46 = vector.broadcast %45 : vector<10x1xi1> to vector<10x32xi1>
    %47 = vector.shape_cast %44 : vector<1x32xf32> to vector<1x32xf32>
    %48 = vector.broadcast %47 : vector<1x32xf32> to vector<10x32xf32>
    %49 = vector.broadcast %cst_21 : f32 to vector<10x32xf32>
    %50 = arith.select %46, %48, %49 : vector<10x32xi1>, vector<10x32xf32>
    %51 = arith.addf %41, %50 : vector<10x32xf32>
    %cst_22 = arith.constant 3.000000e+00 : f32
    %52 = vector.broadcast %cst_22 : f32 to vector<10x1xf32>
    %53 = arith.cmpf oeq, %2, %52 : vector<10x1xf32>
    %c6 = arith.constant 6 : index
    %c0_23 = arith.constant 0 : index
    %54 = vector.load %arg1[%c6, %c0_23] : memref<8x32xf32, #tpu.memory_space<vmem>>, vector<1x32xf32>
    %cst_24 = arith.constant 0.000000e+00 : f32
    %55 = vector.shape_cast %53 : vector<10x1xi1> to vector<10x1xi1>
    %56 = vector.broadcast %55 : vector<10x1xi1> to vector<10x32xi1>
    %57 = vector.shape_cast %54 : vector<1x32xf32> to vector<1x32xf32>
    %58 = vector.broadcast %57 : vector<1x32xf32> to vector<10x32xf32>
    %59 = vector.broadcast %cst_24 : f32 to vector<10x32xf32>
    %60 = arith.select %56, %58, %59 : vector<10x32xi1>, vector<10x32xf32>
    %61 = arith.addf %51, %60 : vector<10x32xf32>
    %cst_25 = arith.constant -1.000000e+00 : f32
    %62 = vector.broadcast %cst_25 : f32 to vector<10x1xf32>
    %63 = arith.cmpf oeq, %2, %62 : vector<10x1xf32>
    %64 = vector.extract_strided_slice %22 {offsets = [0, 0], sizes = [1, 16], strides = [1, 1]} : vector<1x32xf32> to vector<1x16xf32>
    %65 = math.sin %21 : vector<10x16xf32>
    %66 = vector.extract_strided_slice %61 {offsets = [0, 0], sizes = [10, 16], strides = [1, 1]} : vector<10x32xf32> to vector<10x16xf32>
    %67 = arith.addf %65, %66 : vector<10x16xf32>
    %68 = vector.shape_cast %63 : vector<10x1xi1> to vector<10x1xi1>
    %69 = vector.broadcast %68 : vector<10x1xi1> to vector<10x16xi1>
    %70 = vector.shape_cast %64 : vector<1x16xf32> to vector<1x16xf32>
    %71 = vector.broadcast %70 : vector<1x16xf32> to vector<10x16xf32>
    %72 = arith.select %69, %71, %67 : vector<10x16xi1>, vector<10x16xf32>
    %c0_26 = arith.constant 0 : index
    %c0_27 = arith.constant 0 : index
    %73 = vector.load %arg2[%c0_26, %c0_27] : memref<10x32xf32, #tpu.memory_space<vmem>>, vector<10x16xf32>
    tpu.vector_store %arg2[%c0_26, %c0_27], %72 {strides = array<i32>} : memref<10x32xf32, #tpu.memory_space<vmem>>, vector<10x16xf32>,
    %74 = vector.extract_strided_slice %22 {offsets = [0, 16], sizes = [1, 16], strides = [1, 1]} : vector<1x32xf32> to vector<1x16xf32>
    %75 = math.cos %21 : vector<10x16xf32>
    %76 = vector.extract_strided_slice %61 {offsets = [0, 16], sizes = [10, 16], strides = [1, 1]} : vector<10x32xf32> to vector<10x16xf32>
    %77 = arith.addf %75, %76 : vector<10x16xf32>
    %78 = vector.shape_cast %63 : vector<10x1xi1> to vector<10x1xi1>
    %79 = vector.broadcast %78 : vector<10x1xi1> to vector<10x16xi1>
    %80 = vector.shape_cast %74 : vector<1x16xf32> to vector<1x16xf32>
    %81 = vector.broadcast %80 : vector<1x16xf32> to vector<10x16xf32>
    %82 = arith.select %79, %81, %77 : vector<10x16xi1>, vector<10x16xf32>
    %c0_28 = arith.constant 0 : index
    %c16 = arith.constant 16 : index
    %83 = vector.load %arg2[%c0_28, %c16] : memref<10x32xf32, #tpu.memory_space<vmem>>, vector<10x16xf32>
    tpu.vector_store %arg2[%c0_28, %c16], %82 {strides = array<i32>} : memref<10x32xf32, #tpu.memory_space<vmem>>, vector<10x16xf32>,
    return
  }
}

</mosaic_0001>

<llo_original>
// kernel: tpu_custom_call.1
$region0: #{tpu_custom_call.1}
  #allocation0 [shape = 'u32[]', space=smem, size = 0x4, offset = 0x4, fixed_abs, tag = 'smem constant byte address 0x4 - core index']
  #allocation1 [shape = 'u32[144,128]{1,0:T(1,128)}', space=vmem, size = 0x12000, scoped, tag = 'internal scratch']
  %s0 = inlined_call_operand.vmem [shape: f32[10,8], index: 0, kind: input, shape index: {}]
  %s1 = inlined_call_operand.vmem [shape: f32[8,32], index: 1, kind: input, shape index: {}]
  %s2 = inlined_call_operand.hbm [shape: f32[10,32], index: 2, kind: output, shape index: {}]
  %s3 = sld [smem:[#allocation0]]
  $region18: #{tpu_custom_call.1} parent=0
    _
  %s5 = ssub.s32 1, %s3
  %s6 = scalar_select 0, %s5, %s3
  $region1: #{tpu_custom_call.1} parent=0
    #allocation2 [shape = 'u8[8192]{0}', space=vmem, size = 0x2000, scoped, tag = 'output window, operand 0, single buffered']
    #allocation3 [shape = 's32[1]{0}', space=sflag, size = 0x4, scoped, tag = 'scoped memory for tpu_custom_call.1']
    %7 = vsyncpa [#allocation3], 0
    // Predicated region
    $region2: #{tpu_custom_call.1} parent=1 // pred_check
      _
    $region3: #{tpu_custom_call.1} parent=1 // pred_check_branch
      %9 = sbr.rel (0) target = $region5
    $region4: #{tpu_custom_call.1} parent=1 // pred_region
      _
    $region5: #{tpu_custom_call.1} parent=1 // pred_fallthru
      _
    // Predicated region
    $region6: #{tpu_custom_call.1} parent=1 // pred_check
      _
    $region7: #{tpu_custom_call.1} parent=1 // pred_check_branch
      %11 = sbr.rel (0) target = $region9
    $region8: #{tpu_custom_call.1} parent=1 // pred_region
      _
    $region9: #{tpu_custom_call.1} parent=1 // pred_fallthru
      _
    %v12 = vld [vmem:[%s0] sm:$0xff]
    %v13 = vld [vmem:[%s0 + $0x8] sm:$0x3]
    %v14 = vmul.f32 %v12, 2.0
    %v15 = vmul.f32 %v13, 2.0
    %v16 = vsub.f32 %v14, 1.0
    %v17 = vsub.f32 %v15, 1.0
    %v18 = vld [vmem:[%s1] sm:$0x1]
    %20 = vset.pattern.permute.xlu0 0
    %21 = vperm.xlu0 %20, %v16
    %v22 = vpop.permute.xlu0 %21
    %25 = vset.pattern.permute.xlu0 0
    %26 = vperm.xlu0 %25, %v17
    %v27 = vpop.permute.xlu0 %26
    %v29 = vlaneseq
    %v30 = vshrl.u32 %v29, 7
    %v31 = vsub.s32 0, %v30
    %v32 = vrot.slane %v18, %v31
    %v33 = vmul.f32 %v22, %v32
    %v34 = vmul.f32 %v27, %v32
    %v35 = vld [vmem:[%s1 + $0x1] sm:$0x1]
    %36 = vset.pattern.permute.xlu0 1
    %37 = vperm.xlu0 %36, %v16
    %v38 = vpop.permute.xlu0 %37
    %40 = vset.pattern.permute.xlu0 1
    %41 = vperm.xlu0 %40, %v17
    %v42 = vpop.permute.xlu0 %41
    %v44 = vlaneseq
    %v45 = vshrl.u32 %v44, 7
    %v46 = vsub.s32 0, %v45
    %v47 = vrot.slane %v35, %v46
    %v48 = vmul.f32 %v38, %v47
    %v49 = vmul.f32 %v42, %v47
    %v50 = vadd.f32 %v33, %v48
    %v51 = vadd.f32 %v34, %v49
    %v52 = vmul.f32 %v50, 6.2831855
    %v53 = vmul.f32 %v51, 6.2831855
    %v54 = vld [vmem:[%s1 + $0x2] sm:$0x1]
    %vm55 = vcmp.eq.f32.partialorder %v12, 0.0
    %vm56 = vcmp.eq.f32.partialorder %v13, 0.0
    %v57 = vld [vmem:[%s1 + $0x3] sm:$0x1]
    %v58 = vsel %vm55, 1, 0
    %v59 = vsel %vm56, 1, 0
    %60 = vset.pattern.permute.xlu0 2
    %61 = vperm.xlu0 %60, %v58
    %v62 = vpop.permute.xlu0 %61
    %63 = vset.pattern.permute.xlu0 2
    %64 = vperm.xlu0 %63, %v59
    %v65 = vpop.permute.xlu0 %64
    %vm66 = vcmp.eq.s32.totalorder %v62, 1
    %vm67 = vcmp.eq.s32.totalorder %v65, 1
    %v68 = vlaneseq
    %v69 = vshrl.u32 %v68, 7
    %v70 = vsub.s32 0, %v69
    %v71 = vrot.slane %v57, %v70
    %v72 = vsel %vm66, %v71, 0.0
    %v73 = vsel %vm67, %v71, 0.0
    %vm74 = vcmp.eq.f32.partialorder %v12, 1.0
    %vm75 = vcmp.eq.f32.partialorder %v13, 1.0
    %v76 = vld [vmem:[%s1 + $0x4] sm:$0x1]
    %v77 = vsel %vm74, 1, 0
    %v78 = vsel %vm75, 1, 0
    %79 = vset.pattern.permute.xlu0 2
    %80 = vperm.xlu0 %79, %v77
    %v81 = vpop.permute.xlu0 %80
    %82 = vset.pattern.permute.xlu0 2
    %83 = vperm.xlu0 %82, %v78
    %v84 = vpop.permute.xlu0 %83
    %vm85 = vcmp.eq.s32.totalorder %v81, 1
    %vm86 = vcmp.eq.s32.totalorder %v84, 1
    %v87 = vlaneseq
    %v88 = vshrl.u32 %v87, 7
    %v89 = vsub.s32 0, %v88
    %v90 = vrot.slane %v76, %v89
    %v91 = vsel %vm85, %v90, 0.0
    %v92 = vsel %vm86, %v90, 0.0
    %v93 = vadd.f32 %v72, %v91
    %v94 = vadd.f32 %v73, %v92
    %vm95 = vcmp.eq.f32.partialorder %v12, 2.0
    %vm96 = vcmp.eq.f32.partialorder %v13, 2.0
    %v97 = vld [vmem:[%s1 + $0x5] sm:$0x1]
    %v98 = vsel %vm95, 1, 0
    %v99 = vsel %vm96, 1, 0
    %100 = vset.pattern.permute.xlu0 2
    %101 = vperm.xlu0 %100, %v98
    %v102 = vpop.permute.xlu0 %101
    %103 = vset.pattern.permute.xlu0 2
    %104 = vperm.xlu0 %103, %v99
    %v105 = vpop.permute.xlu0 %104
    %vm106 = vcmp.eq.s32.totalorder %v102, 1
    %vm107 = vcmp.eq.s32.totalorder %v105, 1
    %v108 = vlaneseq
    %v109 = vshrl.u32 %v108, 7
    %v110 = vsub.s32 0, %v109
    %v111 = vrot.slane %v97, %v110
    %v112 = vsel %vm106, %v111, 0.0
    %v113 = vsel %vm107, %v111, 0.0
    %v114 = vadd.f32 %v93, %v112
    %v115 = vadd.f32 %v94, %v113
    %vm116 = vcmp.eq.f32.partialorder %v12, 3.0
    %vm117 = vcmp.eq.f32.partialorder %v13, 3.0
    %v118 = vld [vmem:[%s1 + $0x6] sm:$0x1]
    %v119 = vsel %vm116, 1, 0
    %v120 = vsel %vm117, 1, 0
    %121 = vset.pattern.permute.xlu0 2
    %122 = vperm.xlu0 %121, %v119
    %v123 = vpop.permute.xlu0 %122
    %124 = vset.pattern.permute.xlu0 2
    %125 = vperm.xlu0 %124, %v120
    %v126 = vpop.permute.xlu0 %125
    %vm127 = vcmp.eq.s32.totalorder %v123, 1
    %vm128 = vcmp.eq.s32.totalorder %v126, 1
    %v129 = vlaneseq
    %v130 = vshrl.u32 %v129, 7
    %v131 = vsub.s32 0, %v130
    %v132 = vrot.slane %v118, %v131
    %v133 = vsel %vm127, %v132, 0.0
    %v134 = vsel %vm128, %v132, 0.0
    %v135 = vadd.f32 %v114, %v133
    %v136 = vadd.f32 %v115, %v134
    %vm137 = vcmp.eq.f32.partialorder %v12, -1.0
    %vm138 = vcmp.eq.f32.partialorder %v13, -1.0
    %v139 = vand.u32 2147483647, %v52
    %vm140 = vcmp.le.f32.partialorder %v139, 0.7853982
    %vm141 = vcmp.lt.s32.totalorder %v52, 0
    %v142 = vand.u32 %v52, 2139095040
    %v143 = vshrl.u32 %v142, 23
    %v144 = vsub.s32 %v143, 127
    %v145 = vand.u32 2147483647, %v52
    %v146 = vand.u32 %v145, 8388607
    %v147 = vor.u32 %v146, 8388608
    %v148 = vsub.s32 0, %v147
    %v149 = vadd.s32 %v144, 1
    %vm150 = vcmp.gt.s32.totalorder %v149, 0
    %v151 = vsel %vm150, %v149, 0
    %v152 = vshrl.u32 %v151, 5
    %v153 = vand.u32 %v151, 31
    %v154 = vsub.s32 32, %v153
    %v155 = vshrl.u32 683565275, %v154
    %v156 = vshll.u32 683565275, %v153
    %v157 = vshrl.u32 2475754826, %v154
    %v158 = vor.u32 %v156, %v157
    %v159 = vshll.u32 2475754826, %v153
    %v160 = vshrl.u32 2131351028, %v154
    %v161 = vor.u32 %v159, %v160
    %v162 = vshll.u32 2131351028, %v153
    %v163 = vshrl.u32 2102212464, %v154
    %v164 = vor.u32 %v162, %v163
    %v165 = vshll.u32 2102212464, %v153
    %v166 = vshrl.u32 920167782, %v154
    %v167 = vor.u32 %v165, %v166
    %v168 = vshll.u32 920167782, %v153
    %v169 = vshrl.u32 1326507024, %v154
    %v170 = vor.u32 %v168, %v169
    %vm171 = vcmp.lt.s32.totalorder %v152, 1
    %vm172 = vcmp.lt.s32.totalorder %v152, 2
    %vm173 = vcmp.lt.s32.totalorder %v152, 3
    %vm174 = vcmp.lt.s32.totalorder %v152, 4
    %v175 = vsel %vm171, %v155, %v158
    %v176 = vsel %vm174, %v164, 2102212464
    %v177 = vsel %vm173, %v161, %v176
    %v178 = vsel %vm172, %v175, %v177
    %v179 = vsel %vm171, %v158, %v161
    %v180 = vsel %vm174, %v167, 920167782
    %v181 = vsel %vm173, %v164, %v180
    %v182 = vsel %vm172, %v179, %v181
    %v183 = vsel %vm171, %v161, %v164
    %v184 = vsel %vm174, %v170, 1326507024
    %v185 = vsel %vm173, %v167, %v184
    %v186 = vsel %vm172, %v183, %v185
    %v187 = vshll.u32 %v147, 8
    %v188 = vmul.u32.u64.compose %v187, %v186
    %v189 = vextract.low.u32 %v188
    %v190 = vextract.high.u32 %v188
    %v191 = vmul.u32.u64.compose %v187, %v182
    %v192 = vextract.low.u32 %v191
    %v193 = vextract.high.u32 %v191
    %v194 = vmul.u32 %v187, %v178
    %v195 = vadd.s32 %v190, %v192
    %vm196 = vc.u32 %v190, %v192
    %v197 = vadd.s32 %v193, 1
    %v198 = vsel %vm196, %v197, %v193
    %v199 = vadd.s32 %v194, %v198
    %v200 = vadd.s32 %v199, 536870912
    %v201 = vshrl.u32 %v200, 30
    %v202 = vshll.u32 %v201, 30
    %v203 = vsub.s32 %v199, %v202
    %vm204 = vcmp.lt.s32.totalorder %v203, 0
    %v205 = vsub.s32 0, %v203
    %v206 = vsel %vm204, %v205, %v203
    %v207 = vclz %v206
    %v208 = vsub.s32 %v207, 2
    %vm209 = vcmp.gt.s32.totalorder 0, %v208
    %v210 = vsel %vm209, 0, %v208
    %v211 = vsub.s32 32, %v210
    %v212 = vshll.u32 %v203, %v210
    %v213 = vshrl.u32 %v195, %v211
    %v214 = vor.u32 %v212, %v213
    %v215 = vsub.s32 4294967266, %v210
    %v216 = vadd.s32 %v215, 127
    %v217 = vshll.u32 %v216, 23
    %v218 = vor.u32 4788187, %v217
    %v219 = vand.u32 2147483647, %v218
    %v221 = vcvt.s32.f32 %v214
    %v222 = vmul.f32 %v221, %v219
    %v223 = vxor.u32 %v222, 2147483648
    %v224 = vsel %vm141, %v223, %v222
    %v225 = vsub.s32 4, %v201
    %v226 = vsel %vm141, %v225, %v201
    %v227 = vsel %vm140, %v52, %v224
    %v228 = vsel %vm140, 0, %v226
    %v229 = vcosq.f32.pop %v227
    %v230 = vsinq.f32.pop %v227
    %vm231 = vweird.f32 %v52
    %v232 = vadd.s32 %v228, 3
    %v233 = vand.u32 %v232, 3
    %vm234 = vcmp.lt.s32.totalorder %v233, 2
    %vm235 = vcmp.eq.s32.totalorder %v233, 0
    %v236 = vxor.u32 %v230, 2147483648
    %v237 = vsel %vm235, %v229, %v236
    %vm238 = vcmp.eq.s32.totalorder %v233, 2
    %v239 = vxor.u32 %v229, 2147483648
    %v240 = vsel %vm238, %v239, %v230
    %v241 = vsel %vm234, %v237, %v240
    %v242 = vsel %vm231, nan, %v241
    %v243 = vand.u32 2147483647, %v53
    %vm244 = vcmp.le.f32.partialorder %v243, 0.7853982
    %vm245 = vcmp.lt.s32.totalorder %v53, 0
    %v246 = vand.u32 %v53, 2139095040
    %v247 = vshrl.u32 %v246, 23
    %v248 = vsub.s32 %v247, 127
    %v249 = vand.u32 2147483647, %v53
    %v250 = vand.u32 %v249, 8388607
    %v251 = vor.u32 %v250, 8388608
    %v252 = vsub.s32 0, %v251
    %v253 = vadd.s32 %v248, 1
    %vm254 = vcmp.gt.s32.totalorder %v253, 0
    %v255 = vsel %vm254, %v253, 0
    %v256 = vshrl.u32 %v255, 5
    %v257 = vand.u32 %v255, 31
    %v258 = vsub.s32 32, %v257
    %v259 = vshrl.u32 683565275, %v258
    %v260 = vshll.u32 683565275, %v257
    %v261 = vshrl.u32 2475754826, %v258
    %v262 = vor.u32 %v260, %v261
    %v263 = vshll.u32 2475754826, %v257
    %v264 = vshrl.u32 2131351028, %v258
    %v265 = vor.u32 %v263, %v264
    %v266 = vshll.u32 2131351028, %v257
    %v267 = vshrl.u32 2102212464, %v258
    %v268 = vor.u32 %v266, %v267
    %v269 = vshll.u32 2102212464, %v257
    %v270 = vshrl.u32 920167782, %v258
    %v271 = vor.u32 %v269, %v270
    %v272 = vshll.u32 920167782, %v257
    %v273 = vshrl.u32 1326507024, %v258
    %v274 = vor.u32 %v272, %v273
    %vm275 = vcmp.lt.s32.totalorder %v256, 1
    %vm276 = vcmp.lt.s32.totalorder %v256, 2
    %vm277 = vcmp.lt.s32.totalorder %v256, 3
    %vm278 = vcmp.lt.s32.totalorder %v256, 4
    %v279 = vsel %vm275, %v259, %v262
    %v280 = vsel %vm278, %v268, 2102212464
    %v281 = vsel %vm277, %v265, %v280
    %v282 = vsel %vm276, %v279, %v281
    %v283 = vsel %vm275, %v262, %v265
    %v284 = vsel %vm278, %v271, 920167782
    %v285 = vsel %vm277, %v268, %v284
    %v286 = vsel %vm276, %v283, %v285
    %v287 = vsel %vm275, %v265, %v268
    %v288 = vsel %vm278, %v274, 1326507024
    %v289 = vsel %vm277, %v271, %v288
    %v290 = vsel %vm276, %v287, %v289
    %v291 = vshll.u32 %v251, 8
    %v292 = vmul.u32.u64.compose %v291, %v290
    %v293 = vextract.low.u32 %v292
    %v294 = vextract.high.u32 %v292
    %v295 = vmul.u32.u64.compose %v291, %v286
    %v296 = vextract.low.u32 %v295
    %v297 = vextract.high.u32 %v295
    %v298 = vmul.u32 %v291, %v282
    %v299 = vadd.s32 %v294, %v296
    %vm300 = vc.u32 %v294, %v296
    %v301 = vadd.s32 %v297, 1
    %v302 = vsel %vm300, %v301, %v297
    %v303 = vadd.s32 %v298, %v302
    %v304 = vadd.s32 %v303, 536870912
    %v305 = vshrl.u32 %v304, 30
    %v306 = vshll.u32 %v305, 30
    %v307 = vsub.s32 %v303, %v306
    %vm308 = vcmp.lt.s32.totalorder %v307, 0
    %v309 = vsub.s32 0, %v307
    %v310 = vsel %vm308, %v309, %v307
    %v311 = vclz %v310
    %v312 = vsub.s32 %v311, 2
    %vm313 = vcmp.gt.s32.totalorder 0, %v312
    %v314 = vsel %vm313, 0, %v312
    %v315 = vsub.s32 32, %v314
    %v316 = vshll.u32 %v307, %v314
    %v317 = vshrl.u32 %v299, %v315
    %v318 = vor.u32 %v316, %v317
    %v319 = vsub.s32 4294967266, %v314
    %v320 = vadd.s32 %v319, 127
    %v321 = vshll.u32 %v320, 23
    %v322 = vor.u32 4788187, %v321
    %v323 = vand.u32 2147483647, %v322
    %v325 = vcvt.s32.f32 %v318
    %v326 = vmul.f32 %v325, %v323
    %v327 = vxor.u32 %v326, 2147483648
    %v328 = vsel %vm245, %v327, %v326
    %v329 = vsub.s32 4, %v305
    %v330 = vsel %vm245, %v329, %v305
    %v331 = vsel %vm244, %v53, %v328
    %v332 = vsel %vm244, 0, %v330
    %v333 = vcosq.f32.pop %v331
    %v334 = vsinq.f32.pop %v331
    %vm335 = vweird.f32 %v53
    %v336 = vadd.s32 %v332, 3
    %v337 = vand.u32 %v336, 3
    %vm338 = vcmp.lt.s32.totalorder %v337, 2
    %vm339 = vcmp.eq.s32.totalorder %v337, 0
    %v340 = vxor.u32 %v334, 2147483648
    %v341 = vsel %vm339, %v333, %v340
    %vm342 = vcmp.eq.s32.totalorder %v337, 2
    %v343 = vxor.u32 %v333, 2147483648
    %v344 = vsel %vm342, %v343, %v334
    %v345 = vsel %vm338, %v341, %v344
    %v346 = vsel %vm335, nan, %v345
    %v347 = vadd.f32 %v242, %v135
    %v348 = vadd.f32 %v346, %v136
    %v349 = vsel %vm137, 1, 0
    %v350 = vsel %vm138, 1, 0
    %351 = vset.pattern.permute.xlu0 2
    %352 = vperm.xlu0 %351, %v349
    %v353 = vpop.permute.xlu0 %352
    %354 = vset.pattern.permute.xlu0 2
    %355 = vperm.xlu0 %354, %v350
    %v356 = vpop.permute.xlu0 %355
    %vm357 = vcmp.eq.s32.totalorder %v353, 1
    %vm358 = vcmp.eq.s32.totalorder %v356, 1
    %v359 = vlaneseq
    %v360 = vshrl.u32 %v359, 7
    %v361 = vsub.s32 0, %v360
    %v362 = vrot.slane %v54, %v361
    %v363 = vsel %vm357, %v362, %v347
    %v364 = vsel %vm358, %v362, %v348
    %vm365 = vcmask 130048
    %366 = vst.msk [vmem:[#allocation2] sm:$0xff] %vm365, %v363
    %vm367 = vcmask 123904
    %368 = vst.msk [vmem:[#allocation2 + $0x8] sm:$0x3] %vm367, %v364
    %v369 = vand.u32 2147483647, %v52
    %vm370 = vcmp.le.f32.partialorder %v369, 0.7853982
    %vm371 = vcmp.lt.s32.totalorder %v52, 0
    %v372 = vand.u32 %v52, 2139095040
    %v373 = vshrl.u32 %v372, 23
    %v374 = vsub.s32 %v373, 127
    %v375 = vand.u32 2147483647, %v52
    %v376 = vand.u32 %v375, 8388607
    %v377 = vor.u32 %v376, 8388608
    %v378 = vsub.s32 0, %v377
    %v379 = vadd.s32 %v374, 1
    %vm380 = vcmp.gt.s32.totalorder %v379, 0
    %v381 = vsel %vm380, %v379, 0
    %v382 = vshrl.u32 %v381, 5
    %v383 = vand.u32 %v381, 31
    %v384 = vsub.s32 32, %v383
    %v385 = vshrl.u32 683565275, %v384
    %v386 = vshll.u32 683565275, %v383
    %v387 = vshrl.u32 2475754826, %v384
    %v388 = vor.u32 %v386, %v387
    %v389 = vshll.u32 2475754826, %v383
    %v390 = vshrl.u32 2131351028, %v384
    %v391 = vor.u32 %v389, %v390
    %v392 = vshll.u32 2131351028, %v383
    %v393 = vshrl.u32 2102212464, %v384
    %v394 = vor.u32 %v392, %v393
    %v395 = vshll.u32 2102212464, %v383
    %v396 = vshrl.u32 920167782, %v384
    %v397 = vor.u32 %v395, %v396
    %v398 = vshll.u32 920167782, %v383
    %v399 = vshrl.u32 1326507024, %v384
    %v400 = vor.u32 %v398, %v399
    %vm401 = vcmp.lt.s32.totalorder %v382, 1
    %vm402 = vcmp.lt.s32.totalorder %v382, 2
    %vm403 = vcmp.lt.s32.totalorder %v382, 3
    %vm404 = vcmp.lt.s32.totalorder %v382, 4
    %v405 = vsel %vm401, %v385, %v388
    %v406 = vsel %vm404, %v394, 2102212464
    %v407 = vsel %vm403, %v391, %v406
    %v408 = vsel %vm402, %v405, %v407
    %v409 = vsel %vm401, %v388, %v391
    %v410 = vsel %vm404, %v397, 920167782
    %v411 = vsel %vm403, %v394, %v410
    %v412 = vsel %vm402, %v409, %v411
    %v413 = vsel %vm401, %v391, %v394
    %v414 = vsel %vm404, %v400, 1326507024
    %v415 = vsel %vm403, %v397, %v414
    %v416 = vsel %vm402, %v413, %v415
    %v417 = vshll.u32 %v377, 8
    %v418 = vmul.u32.u64.compose %v417, %v416
    %v419 = vextract.low.u32 %v418
    %v420 = vextract.high.u32 %v418
    %v421 = vmul.u32.u64.compose %v417, %v412
    %v422 = vextract.low.u32 %v421
    %v423 = vextract.high.u32 %v421
    %v424 = vmul.u32 %v417, %v408
    %v425 = vadd.s32 %v420, %v422
    %vm426 = vc.u32 %v420, %v422
    %v427 = vadd.s32 %v423, 1
    %v428 = vsel %vm426, %v427, %v423
    %v429 = vadd.s32 %v424, %v428
    %v430 = vadd.s32 %v429, 536870912
    %v431 = vshrl.u32 %v430, 30
    %v432 = vshll.u32 %v431, 30
    %v433 = vsub.s32 %v429, %v432
    %vm434 = vcmp.lt.s32.totalorder %v433, 0
    %v435 = vsub.s32 0, %v433
    %v436 = vsel %vm434, %v435, %v433
    %v437 = vclz %v436
    %v438 = vsub.s32 %v437, 2
    %vm439 = vcmp.gt.s32.totalorder 0, %v438
    %v440 = vsel %vm439, 0, %v438
    %v441 = vsub.s32 32, %v440
    %v442 = vshll.u32 %v433, %v440
    %v443 = vshrl.u32 %v425, %v441
    %v444 = vor.u32 %v442, %v443
    %v445 = vsub.s32 4294967266, %v440
    %v446 = vadd.s32 %v445, 127
    %v447 = vshll.u32 %v446, 23
    %v448 = vor.u32 4788187, %v447
    %v449 = vand.u32 2147483647, %v448
    %v451 = vcvt.s32.f32 %v444
    %v452 = vmul.f32 %v451, %v449
    %v453 = vxor.u32 %v452, 2147483648
    %v454 = vsel %vm371, %v453, %v452
    %v455 = vsub.s32 4, %v431
    %v456 = vsel %vm371, %v455, %v431
    %v457 = vsel %vm370, %v52, %v454
    %v458 = vsel %vm370, 0, %v456
    %v459 = vcosq.f32.pop %v457
    %v460 = vsinq.f32.pop %v457
    %vm461 = vweird.f32 %v52
    %v462 = vand.u32 %v458, 3
    %vm463 = vcmp.lt.s32.totalorder %v462, 2
    %vm464 = vcmp.eq.s32.totalorder %v462, 0
    %v465 = vxor.u32 %v460, 2147483648
    %v466 = vsel %vm464, %v459, %v465
    %vm467 = vcmp.eq.s32.totalorder %v462, 2
    %v468 = vxor.u32 %v459, 2147483648
    %v469 = vsel %vm467, %v468, %v460
    %v470 = vsel %vm463, %v466, %v469
    %v471 = vsel %vm461, nan, %v470
    %v472 = vand.u32 2147483647, %v53
    %vm473 = vcmp.le.f32.partialorder %v472, 0.7853982
    %vm474 = vcmp.lt.s32.totalorder %v53, 0
    %v475 = vand.u32 %v53, 2139095040
    %v476 = vshrl.u32 %v475, 23
    %v477 = vsub.s32 %v476, 127
    %v478 = vand.u32 2147483647, %v53
    %v479 = vand.u32 %v478, 8388607
    %v480 = vor.u32 %v479, 8388608
    %v481 = vsub.s32 0, %v480
    %v482 = vadd.s32 %v477, 1
    %vm483 = vcmp.gt.s32.totalorder %v482, 0
    %v484 = vsel %vm483, %v482, 0
    %v485 = vshrl.u32 %v484, 5
    %v486 = vand.u32 %v484, 31
    %v487 = vsub.s32 32, %v486
    %v488 = vshrl.u32 683565275, %v487
    %v489 = vshll.u32 683565275, %v486
    %v490 = vshrl.u32 2475754826, %v487
    %v491 = vor.u32 %v489, %v490
    %v492 = vshll.u32 2475754826, %v486
    %v493 = vshrl.u32 2131351028, %v487
    %v494 = vor.u32 %v492, %v493
    %v495 = vshll.u32 2131351028, %v486
    %v496 = vshrl.u32 2102212464, %v487
    %v497 = vor.u32 %v495, %v496
    %v498 = vshll.u32 2102212464, %v486
    %v499 = vshrl.u32 920167782, %v487
    %v500 = vor.u32 %v498, %v499
    %v501 = vshll.u32 920167782, %v486
    %v502 = vshrl.u32 1326507024, %v487
    %v503 = vor.u32 %v501, %v502
    %vm504 = vcmp.lt.s32.totalorder %v485, 1
    %vm505 = vcmp.lt.s32.totalorder %v485, 2
    %vm506 = vcmp.lt.s32.totalorder %v485, 3
    %vm507 = vcmp.lt.s32.totalorder %v485, 4
    %v508 = vsel %vm504, %v488, %v491
    %v509 = vsel %vm507, %v497, 2102212464
    %v510 = vsel %vm506, %v494, %v509
    %v511 = vsel %vm505, %v508, %v510
    %v512 = vsel %vm504, %v491, %v494
    %v513 = vsel %vm507, %v500, 920167782
    %v514 = vsel %vm506, %v497, %v513
    %v515 = vsel %vm505, %v512, %v514
    %v516 = vsel %vm504, %v494, %v497
    %v517 = vsel %vm507, %v503, 1326507024
    %v518 = vsel %vm506, %v500, %v517
    %v519 = vsel %vm505, %v516, %v518
    %v520 = vshll.u32 %v480, 8
    %v521 = vmul.u32.u64.compose %v520, %v519
    %v522 = vextract.low.u32 %v521
    %v523 = vextract.high.u32 %v521
    %v524 = vmul.u32.u64.compose %v520, %v515
    %v525 = vextract.low.u32 %v524
    %v526 = vextract.high.u32 %v524
    %v527 = vmul.u32 %v520, %v511
    %v528 = vadd.s32 %v523, %v525
    %vm529 = vc.u32 %v523, %v525
    %v530 = vadd.s32 %v526, 1
    %v531 = vsel %vm529, %v530, %v526
    %v532 = vadd.s32 %v527, %v531
    %v533 = vadd.s32 %v532, 536870912
    %v534 = vshrl.u32 %v533, 30
    %v535 = vshll.u32 %v534, 30
    %v536 = vsub.s32 %v532, %v535
    %vm537 = vcmp.lt.s32.totalorder %v536, 0
    %v538 = vsub.s32 0, %v536
    %v539 = vsel %vm537, %v538, %v536
    %v540 = vclz %v539
    %v541 = vsub.s32 %v540, 2
    %vm542 = vcmp.gt.s32.totalorder 0, %v541
    %v543 = vsel %vm542, 0, %v541
    %v544 = vsub.s32 32, %v543
    %v545 = vshll.u32 %v536, %v543
    %v546 = vshrl.u32 %v528, %v544
    %v547 = vor.u32 %v545, %v546
    %v548 = vsub.s32 4294967266, %v543
    %v549 = vadd.s32 %v548, 127
    %v550 = vshll.u32 %v549, 23
    %v551 = vor.u32 4788187, %v550
    %v552 = vand.u32 2147483647, %v551
    %v554 = vcvt.s32.f32 %v547
    %v555 = vmul.f32 %v554, %v552
    %v556 = vxor.u32 %v555, 2147483648
    %v557 = vsel %vm474, %v556, %v555
    %v558 = vsub.s32 4, %v534
    %v559 = vsel %vm474, %v558, %v534
    %v560 = vsel %vm473, %v53, %v557
    %v561 = vsel %vm473, 0, %v559
    %v562 = vcosq.f32.pop %v560
    %v563 = vsinq.f32.pop %v560
    %vm564 = vweird.f32 %v53
    %v565 = vand.u32 %v561, 3
    %vm566 = vcmp.lt.s32.totalorder %v565, 2
    %vm567 = vcmp.eq.s32.totalorder %v565, 0
    %v568 = vxor.u32 %v563, 2147483648
    %v569 = vsel %vm567, %v562, %v568
    %vm570 = vcmp.eq.s32.totalorder %v565, 2
    %v571 = vxor.u32 %v562, 2147483648
    %v572 = vsel %vm570, %v571, %v563
    %v573 = vsel %vm566, %v569, %v572
    %v574 = vsel %vm564, nan, %v573
    %577 = vrot.lane.b32.xlu0 %v135, 112
    %v578 = vpop.permute.xlu0 %577
    %579 = vrot.lane.b32.xlu0 %v136, 112
    %v580 = vpop.permute.xlu0 %579
    %v583 = vadd.f32 %v471, %v578
    %v584 = vadd.f32 %v574, %v580
    %587 = vrot.lane.b32.xlu0 %v583, 16
    %v588 = vpop.permute.xlu0 %587
    %589 = vrot.lane.b32.xlu0 %v584, 16
    %v590 = vpop.permute.xlu0 %589
    %v593 = vsel %vm357, %v362, %v588
    %v594 = vsel %vm358, %v362, %v590
    %vm595 = vcmask 261248
    %596 = vst.msk [vmem:[#allocation2] sm:$0xff] %vm595, %v593
    %vm597 = vcmask 255104
    %598 = vst.msk [vmem:[#allocation2 + $0x8] sm:$0x3] %vm597, %v594
    // Predicated region
    $region10: #{tpu_custom_call.1} parent=1 // pred_check
      _
    $region11: #{tpu_custom_call.1} parent=1 // pred_check_branch
      %600 = sbr.rel (0) target = $region13
    $region12: #{tpu_custom_call.1} parent=1 // pred_region
      %s602 = ssub.s32 256, 256
      %603 = vsyncadd [#allocation3], %s602
      %s604 = sshll.u32 [#allocation2], 4
      %s605 = int_to_ptr.vmem [resolvable:$true] %s604
      %610 = dma.vmem_to_hbm [thread:$0]  %s605, 256, %s2, [#allocation3], 128, 128, 8
    $region13: #{tpu_custom_call.1} parent=1 // pred_fallthru
      _
    // Predicated region
    $region14: #{tpu_custom_call.1} parent=1 // pred_check
      _
    $region15: #{tpu_custom_call.1} parent=1 // pred_check_branch
      %612 = sbr.rel (0) target = $region17
    $region16: #{tpu_custom_call.1} parent=1 // pred_region
      %613 = dma.done [#allocation3], 256
    $region17: #{tpu_custom_call.1} parent=1 // pred_fallthru
      _
    %614 = vsyncpa [#allocation3], 1

</llo_original>
